<compile_context>
chip_gen: v7x
topology: tpu7x:2x2x1
jax: 0.10.0
libtpu: 0.0.40
codegen_flags: <defaults>
</compile_context>

<pallas_src>
import jax
import jax.numpy as jnp
from jax.experimental import pallas as pl
from jax.experimental.pallas import tpu as pltpu

IM_SIZE = 5 * 5                       # imSize[0] * imSize[1]
N_NEURONS = 10
H_DIM = 2 * N_NEURONS                 # 20
OUT_DIM = IM_SIZE + 2 * N_NEURONS     # 45 = [recon | mu | logvar] on sublanes


def _vae_kernel(x_ref,
                w1_ref, b1_ref,
                wenc2_ref, benc2_ref,
                wd2_ref, bd2_ref,
                wd1_ref, bd1_ref,
                eps_ref,
                out_ref):
    # Feature-major: features on sublanes, batch on the lane axis.
    x = x_ref[...]                                                   # (25, Bb)

    # --- encode ---
    h1 = jnp.dot(w1_ref[...], x, preferred_element_type=jnp.float32) + b1_ref[...]
    h1 = jnp.maximum(h1, 0.0)                                        # (20, Bb)

    # fused mu/logvar head: rows [0:10] = mu, rows [10:20] = logvar
    ml = jnp.dot(wenc2_ref[...], h1,
                 preferred_element_type=jnp.float32) + benc2_ref[...]  # (20, Bb)
    mu = ml[:N_NEURONS, :]                                           # (10, Bb)
    logvar = ml[N_NEURONS:, :]                                       # (10, Bb)

    # --- reparametrize: z = mu + eps * exp(0.5 * logvar) ---
    z = mu + eps_ref[...] * jnp.exp(0.5 * logvar)                    # (10, Bb)

    # --- decode ---
    h2 = jnp.dot(wd2_ref[...], z, preferred_element_type=jnp.float32) + bd2_ref[...]
    h2 = jnp.maximum(h2, 0.0)                                        # (20, Bb)
    recon = jnp.dot(wd1_ref[...], h2,
                    preferred_element_type=jnp.float32) + bd1_ref[...]  # (25, Bb)

    # one lane-dense output slab: [recon | mu | logvar] stacked on sublanes
    out_ref[...] = jnp.concatenate([recon, mu, logvar], axis=0)      # (45, Bb)


def vae_forward(x, params, eps_noise, *, block_b=512):
    """Forward pass of `basic`. x is (B, 1, 5, 5) or (B, 25); eps_noise is (B, 10)."""
    assert block_b % 128 == 0, "block_b must be a multiple of the 128-lane width"
    w1, b1, wenc2, benc2, wd2, bd2, wd1, bd1, log_var_final = params

    x2d = x.reshape(-1, IM_SIZE).astype(jnp.float32)                 # x.view(-1, 25)
    B = x2d.shape[0]

    # Effective batch tile: large (default 512) but never bigger than the
    # 128-rounded batch; batch is zero-padded up to a multiple of the tile.
    bb = min(block_b, max(128, ((B + 127) // 128) * 128))
    b_pad = pl.cdiv(B, bb) * bb
    grid = (b_pad // bb,)

    # Transpose to feature-major (batch on lanes) and pad batch with zeros.
    xt = jnp.zeros((IM_SIZE, b_pad), jnp.float32).at[:, :B].set(x2d.T)
    epst = jnp.zeros((N_NEURONS, b_pad), jnp.float32).at[:, :B].set(
        eps_noise.astype(jnp.float32).T)

    def lane_spec(rows):
        return pl.BlockSpec((rows, bb), lambda i: (0, i))

    def full_spec(arr):
        return pl.BlockSpec(arr.shape, lambda i: (0, 0))

    out_t = pl.pallas_call(
        _vae_kernel,
        out_shape=jax.ShapeDtypeStruct((OUT_DIM, b_pad), jnp.float32),
        grid_spec=pltpu.PrefetchScalarGridSpec(
            num_scalar_prefetch=0,
            grid=grid,
            in_specs=[
                lane_spec(IM_SIZE),                   # x^T
                full_spec(w1), full_spec(b1),
                full_spec(wenc2), full_spec(benc2),   # fused mu/std head
                full_spec(wd2), full_spec(bd2),
                full_spec(wd1), full_spec(bd1),
                lane_spec(N_NEURONS),                 # eps^T
            ],
            out_specs=lane_spec(OUT_DIM),
        ),
        compiler_params=pltpu.CompilerParams(
            dimension_semantics=("parallel",)),
    )(xt, w1, b1, wenc2, benc2, wd2, bd2, wd1, bd1, epst)

    recon = out_t[:IM_SIZE, :B].T
    mu = out_t[IM_SIZE:IM_SIZE + N_NEURONS, :B].T
    logvar = out_t[IM_SIZE + N_NEURONS:, :B].T

    # PyTorch returns (x_recon, mu, logvar, None, log_var_final)
    return recon, mu, logvar, None, log_var_final


def init_params(key):
    """Deterministic parameter init mirroring the module's __init__.

    Weights are stored in PyTorch (out, in) orientation; the mu and std heads
    are fused into a single (2*n, 2*n) weight / (2*n, 1) bias.
    """
    def xavier_uniform(k, fan_out, fan_in, gain):
        limit = gain * jnp.sqrt(6.0 / (fan_in + fan_out))
        return jax.random.uniform(k, (fan_out, fan_in), jnp.float32, -limit, limit)

    relu_gain = jnp.sqrt(2.0)
    k1, k2, k3, k4, k5 = jax.random.split(key, 5)

    # fc_enc_1: 25 -> 20
    w1 = xavier_uniform(k1, H_DIM, IM_SIZE, relu_gain / (IM_SIZE * H_DIM))
    b1 = jnp.zeros((H_DIM, 1), jnp.float32)
    # fc_enc_2_mu: 20 -> 10 ; fc_enc_2_std: 20 -> 10 (weight zeroed in init_weights())
    wmu = xavier_uniform(k2, N_NEURONS, H_DIM, relu_gain / (H_DIM * N_NEURONS))
    wstd = jnp.zeros((N_NEURONS, H_DIM), jnp.float32)
    wenc2 = jnp.concatenate([wmu, wstd], axis=0)          # (20, 20) fused head
    benc2 = jnp.zeros((H_DIM, 1), jnp.float32)            # [bmu ; bstd], both zero
    # fc_dec_2: 10 -> 20
    wd2 = xavier_uniform(k4, H_DIM, N_NEURONS, relu_gain / (N_NEURONS * H_DIM))
    bd2 = jnp.zeros((H_DIM, 1), jnp.float32)
    # fc_dec_1: 20 -> 25
    wd1 = xavier_uniform(k5, IM_SIZE, H_DIM, relu_gain / (H_DIM * IM_SIZE))
    bd1 = jnp.zeros((IM_SIZE, 1), jnp.float32)
    # scalar log_var_final parameter
    log_var_final = jnp.float32(0.0)

    return (w1, b1, wenc2, benc2, wd2, bd2, wd1, bd1, log_var_final)


if __name__ == "__main__":
    key = jax.random.PRNGKey(0)
    k_param, k_x, k_eps = jax.random.split(key, 3)

    params = init_params(k_param)

    B = 8
    x = jax.random.normal(k_x, (B, 1, 5, 5), jnp.float32)               # NCHW input
    eps_noise = jax.random.normal(k_eps, (B, N_NEURONS), jnp.float32)   # randn_like(std)

    recon, mu, logvar, _, log_var_final = vae_forward(x, params, eps_noise)
    jax.block_until_ready((recon, mu, logvar, log_var_final))

    # sanity: reference in plain JAX (batch-major, PyTorch orientation)
    w1, b1, wenc2, benc2, wd2, bd2, wd1, bd1, _ = params
    x2d = x.reshape(-1, IM_SIZE)
    h1 = jnp.maximum(x2d @ w1.T + b1.T, 0.0)
    ml = h1 @ wenc2.T + benc2.T
    mu_ref = ml[:, :N_NEURONS]
    lv_ref = ml[:, N_NEURONS:]
    z = mu_ref + eps_noise * jnp.exp(0.5 * lv_ref)
    h2 = jnp.maximum(z @ wd2.T + bd2.T, 0.0)
    recon_ref = h2 @ wd1.T + bd1.T

    assert jnp.allclose(recon, recon_ref, atol=1e-5), "recon mismatch"
    assert jnp.allclose(mu, mu_ref, atol=1e-5), "mu mismatch"
    assert jnp.allclose(logvar, lv_ref, atol=1e-5), "logvar mismatch"

    print("KERNEL_OK")
</pallas_src>

<mosaic_0001>
module attributes {stable_mosaic.version = 11 : i64} {
  func.func @_vae_kernel(%arg0: i32, %arg1: memref<25x128xf32, #tpu.memory_space<vmem>>, %arg2: memref<20x25xf32, #tpu.memory_space<vmem>>, %arg3: memref<20x1xf32, #tpu.memory_space<vmem>>, %arg4: memref<20x20xf32, #tpu.memory_space<vmem>>, %arg5: memref<20x1xf32, #tpu.memory_space<vmem>>, %arg6: memref<20x10xf32, #tpu.memory_space<vmem>>, %arg7: memref<20x1xf32, #tpu.memory_space<vmem>>, %arg8: memref<25x20xf32, #tpu.memory_space<vmem>>, %arg9: memref<25x1xf32, #tpu.memory_space<vmem>>, %arg10: memref<10x128xf32, #tpu.memory_space<vmem>>, %arg11: memref<45x128xf32, #tpu.memory_space<vmem>>) attributes {dimension_semantics = [#tpu.dimension_semantics<parallel>], iteration_bounds = array<i64: 1>, scalar_prefetch = 0 : i64, scratch_operands = 0 : i64, tpu.core_type = #tpu.core_type<tc>, window_params = [{transform_indices = @transform_0, window_bounds = array<i64: 25, 128>}, {pipeline_mode = #tpu.pipeline_mode<synchronous>, transform_indices = @transform_1, window_bounds = array<i64: 20, 25>}, {pipeline_mode = #tpu.pipeline_mode<synchronous>, transform_indices = @transform_2, window_bounds = array<i64: 20, 1>}, {pipeline_mode = #tpu.pipeline_mode<synchronous>, transform_indices = @transform_3, window_bounds = array<i64: 20, 20>}, {pipeline_mode = #tpu.pipeline_mode<synchronous>, transform_indices = @transform_4, window_bounds = array<i64: 20, 1>}, {pipeline_mode = #tpu.pipeline_mode<synchronous>, transform_indices = @transform_5, window_bounds = array<i64: 20, 10>}, {pipeline_mode = #tpu.pipeline_mode<synchronous>, transform_indices = @transform_6, window_bounds = array<i64: 20, 1>}, {pipeline_mode = #tpu.pipeline_mode<synchronous>, transform_indices = @transform_7, window_bounds = array<i64: 25, 20>}, {pipeline_mode = #tpu.pipeline_mode<synchronous>, transform_indices = @transform_8, window_bounds = array<i64: 25, 1>}, {transform_indices = @transform_9, window_bounds = array<i64: 10, 128>}, {transform_indices = @transform_10, window_bounds = array<i64: 45, 128>}]} {
    %c0 = arith.constant 0 : index
    %c0_0 = arith.constant 0 : index
    %0 = vector.load %arg1[%c0, %c0_0] : memref<25x128xf32, #tpu.memory_space<vmem>>, vector<25x128xf32>
    %c0_1 = arith.constant 0 : index
    %c0_2 = arith.constant 0 : index
    %1 = vector.load %arg2[%c0_1, %c0_2] : memref<20x25xf32, #tpu.memory_space<vmem>>, vector<20x25xf32>
    %cst = arith.constant dense<0.000000e+00> : vector<20x128xf32>
    %2 = tpu.matmul %1, %0, %cst {dimension_numbers = #tpu.dot_dimension_numbers<[1], [0], [0], [1], [0, 0, 1, 1], [], []>} : vector<20x25xf32>, vector<25x128xf32>, vector<20x128xf32> -> vector<20x128xf32>
    %c0_3 = arith.constant 0 : index
    %c0_4 = arith.constant 0 : index
    %3 = vector.load %arg3[%c0_3, %c0_4] : memref<20x1xf32, #tpu.memory_space<vmem>>, vector<20x1xf32>
    %4 = vector.broadcast %3 : vector<20x1xf32> to vector<20x128xf32>
    %5 = arith.addf %2, %4 : vector<20x128xf32>
    %cst_5 = arith.constant 0.000000e+00 : f32
    %6 = vector.broadcast %cst_5 : f32 to vector<20x128xf32>
    %7 = arith.maximumf %5, %6 : vector<20x128xf32>
    %c0_6 = arith.constant 0 : index
    %c0_7 = arith.constant 0 : index
    %8 = vector.load %arg4[%c0_6, %c0_7] : memref<20x20xf32, #tpu.memory_space<vmem>>, vector<20x20xf32>
    %cst_8 = arith.constant dense<0.000000e+00> : vector<20x128xf32>
    %9 = tpu.matmul %8, %7, %cst_8 {dimension_numbers = #tpu.dot_dimension_numbers<[1], [0], [0], [1], [0, 0, 1, 1], [], []>} : vector<20x20xf32>, vector<20x128xf32>, vector<20x128xf32> -> vector<20x128xf32>
    %c0_9 = arith.constant 0 : index
    %c0_10 = arith.constant 0 : index
    %10 = vector.load %arg5[%c0_9, %c0_10] : memref<20x1xf32, #tpu.memory_space<vmem>>, vector<20x1xf32>
    %11 = vector.broadcast %10 : vector<20x1xf32> to vector<20x128xf32>
    %12 = arith.addf %9, %11 : vector<20x128xf32>
    %13 = vector.extract_strided_slice %12 {offsets = [0, 0], sizes = [10, 128], strides = [1, 1]} : vector<20x128xf32> to vector<10x128xf32>
    %14 = vector.extract_strided_slice %12 {offsets = [10, 0], sizes = [10, 128], strides = [1, 1]} : vector<20x128xf32> to vector<10x128xf32>
    %c0_11 = arith.constant 0 : index
    %c0_12 = arith.constant 0 : index
    %15 = vector.load %arg10[%c0_11, %c0_12] : memref<10x128xf32, #tpu.memory_space<vmem>>, vector<10x128xf32>
    %cst_13 = arith.constant 5.000000e-01 : f32
    %16 = vector.broadcast %cst_13 : f32 to vector<10x128xf32>
    %17 = arith.mulf %16, %14 : vector<10x128xf32>
    %18 = math.exp %17 : vector<10x128xf32>
    %19 = arith.mulf %15, %18 : vector<10x128xf32>
    %20 = arith.addf %13, %19 : vector<10x128xf32>
    %c0_14 = arith.constant 0 : index
    %c0_15 = arith.constant 0 : index
    %21 = vector.load %arg6[%c0_14, %c0_15] : memref<20x10xf32, #tpu.memory_space<vmem>>, vector<20x10xf32>
    %cst_16 = arith.constant dense<0.000000e+00> : vector<20x128xf32>
    %22 = tpu.matmul %21, %20, %cst_16 {dimension_numbers = #tpu.dot_dimension_numbers<[1], [0], [0], [1], [0, 0, 1, 1], [], []>} : vector<20x10xf32>, vector<10x128xf32>, vector<20x128xf32> -> vector<20x128xf32>
    %c0_17 = arith.constant 0 : index
    %c0_18 = arith.constant 0 : index
    %23 = vector.load %arg7[%c0_17, %c0_18] : memref<20x1xf32, #tpu.memory_space<vmem>>, vector<20x1xf32>
    %24 = vector.broadcast %23 : vector<20x1xf32> to vector<20x128xf32>
    %25 = arith.addf %22, %24 : vector<20x128xf32>
    %cst_19 = arith.constant 0.000000e+00 : f32
    %26 = vector.broadcast %cst_19 : f32 to vector<20x128xf32>
    %27 = arith.maximumf %25, %26 : vector<20x128xf32>
    %c0_20 = arith.constant 0 : index
    %c0_21 = arith.constant 0 : index
    %28 = vector.load %arg8[%c0_20, %c0_21] : memref<25x20xf32, #tpu.memory_space<vmem>>, vector<25x20xf32>
    %cst_22 = arith.constant dense<0.000000e+00> : vector<25x128xf32>
    %29 = tpu.matmul %28, %27, %cst_22 {dimension_numbers = #tpu.dot_dimension_numbers<[1], [0], [0], [1], [0, 0, 1, 1], [], []>} : vector<25x20xf32>, vector<20x128xf32>, vector<25x128xf32> -> vector<25x128xf32>
    %c0_23 = arith.constant 0 : index
    %c0_24 = arith.constant 0 : index
    %30 = vector.load %arg9[%c0_23, %c0_24] : memref<25x1xf32, #tpu.memory_space<vmem>>, vector<25x1xf32>
    %31 = vector.broadcast %30 : vector<25x1xf32> to vector<25x128xf32>
    %32 = arith.addf %29, %31 : vector<25x128xf32>
    %33 = tpu.concatenate %32, %13, %14 in 0 : vector<25x128xf32>, vector<10x128xf32>, vector<10x128xf32> -> vector<45x128xf32>
    %c0_25 = arith.constant 0 : index
    %c0_26 = arith.constant 0 : index
    %34 = vector.load %arg11[%c0_25, %c0_26] : memref<45x128xf32, #tpu.memory_space<vmem>>, vector<45x128xf32>
    tpu.vector_store %arg11[%c0_25, %c0_26], %33 {strides = array<i32>} : memref<45x128xf32, #tpu.memory_space<vmem>>, vector<45x128xf32>,
    return
  }
  func.func @transform_0(%arg0: i32) -> (i32, i32) {
    %c0_i32 = arith.constant 0 : i32
    %c0_i32_0 = arith.constant 0 : i32
    return %c0_i32, %arg0 : i32, i32
  }
  func.func @transform_1(%arg0: i32) -> (i32, i32) {
    %c0_i32 = arith.constant 0 : i32
    %c0_i32_0 = arith.constant 0 : i32
    %c0_i32_1 = arith.constant 0 : i32
    return %c0_i32, %c0_i32_0 : i32, i32
  }
  func.func @transform_2(%arg0: i32) -> (i32, i32) {
    %c0_i32 = arith.constant 0 : i32
    %c0_i32_0 = arith.constant 0 : i32
    %c0_i32_1 = arith.constant 0 : i32
    return %c0_i32, %c0_i32_0 : i32, i32
  }
  func.func @transform_3(%arg0: i32) -> (i32, i32) {
    %c0_i32 = arith.constant 0 : i32
    %c0_i32_0 = arith.constant 0 : i32
    %c0_i32_1 = arith.constant 0 : i32
    return %c0_i32, %c0_i32_0 : i32, i32
  }
  func.func @transform_4(%arg0: i32) -> (i32, i32) {
    %c0_i32 = arith.constant 0 : i32
    %c0_i32_0 = arith.constant 0 : i32
    %c0_i32_1 = arith.constant 0 : i32
    return %c0_i32, %c0_i32_0 : i32, i32
  }
  func.func @transform_5(%arg0: i32) -> (i32, i32) {
    %c0_i32 = arith.constant 0 : i32
    %c0_i32_0 = arith.constant 0 : i32
    %c0_i32_1 = arith.constant 0 : i32
    return %c0_i32, %c0_i32_0 : i32, i32
  }
  func.func @transform_6(%arg0: i32) -> (i32, i32) {
    %c0_i32 = arith.constant 0 : i32
    %c0_i32_0 = arith.constant 0 : i32
    %c0_i32_1 = arith.constant 0 : i32
    return %c0_i32, %c0_i32_0 : i32, i32
  }
  func.func @transform_7(%arg0: i32) -> (i32, i32) {
    %c0_i32 = arith.constant 0 : i32
    %c0_i32_0 = arith.constant 0 : i32
    %c0_i32_1 = arith.constant 0 : i32
    return %c0_i32, %c0_i32_0 : i32, i32
  }
  func.func @transform_8(%arg0: i32) -> (i32, i32) {
    %c0_i32 = arith.constant 0 : i32
    %c0_i32_0 = arith.constant 0 : i32
    %c0_i32_1 = arith.constant 0 : i32
    return %c0_i32, %c0_i32_0 : i32, i32
  }
  func.func @transform_9(%arg0: i32) -> (i32, i32) {
    %c0_i32 = arith.constant 0 : i32
    %c0_i32_0 = arith.constant 0 : i32
    return %c0_i32, %arg0 : i32, i32
  }
  func.func @transform_10(%arg0: i32) -> (i32, i32) {
    %c0_i32 = arith.constant 0 : i32
    %c0_i32_0 = arith.constant 0 : i32
    return %c0_i32, %arg0 : i32, i32
  }
}

</mosaic_0001>

<llo_original>
// kernel: tpu_custom_call.1
$region0: #{tpu_custom_call.1}
  #allocation0 [shape = 'u32[]', space=smem, size = 0x4, offset = 0x4, fixed_abs, tag = 'smem constant byte address 0x4 - core index']
  #allocation1 [shape = 'u32[144,128]{1,0:T(1,128)}', space=vmem, size = 0x12000, scoped, tag = 'internal scratch']
  %s0 = inlined_call_operand.vmem [shape: f32[25,128], index: 0, kind: input, shape index: {}]
  %s1 = inlined_call_operand.vmem [shape: f32[20,25], index: 1, kind: input, shape index: {}]
  %s2 = inlined_call_operand.vmem [shape: f32[20,1], index: 2, kind: input, shape index: {}]
  %s3 = inlined_call_operand.vmem [shape: f32[20,20], index: 3, kind: input, shape index: {}]
  %s4 = inlined_call_operand.vmem [shape: f32[20,1], index: 4, kind: input, shape index: {}]
  %s5 = inlined_call_operand.vmem [shape: f32[20,10], index: 5, kind: input, shape index: {}]
  %s6 = inlined_call_operand.vmem [shape: f32[20,1], index: 6, kind: input, shape index: {}]
  %s7 = inlined_call_operand.vmem [shape: f32[25,20], index: 7, kind: input, shape index: {}]
  %s8 = inlined_call_operand.vmem [shape: f32[25,1], index: 8, kind: input, shape index: {}]
  %s9 = inlined_call_operand.vmem [shape: f32[10,128], index: 9, kind: input, shape index: {}]
  %s10 = inlined_call_operand.hbm [shape: f32[45,128], index: 10, kind: output, shape index: {}]
  %s11 = sld [smem:[#allocation0]]
  $region50: #{tpu_custom_call.1} parent=0
    _
  %s13 = ssub.s32 1, %s11
  %s14 = scalar_select 0, %s13, %s11
  $region1: #{tpu_custom_call.1} parent=0
    #allocation2 [shape = 'u8[24576]{0}', space=vmem, size = 0x6000, scoped, tag = 'output window, operand 0, single buffered']
    #allocation3 [shape = 's32[1]{0}', space=sflag, size = 0x4, scoped, tag = 'scoped memory for tpu_custom_call.1']
    %15 = vsyncpa [#allocation3], 0
    // Predicated region
    $region2: #{tpu_custom_call.1} parent=1 // pred_check
      _
    $region3: #{tpu_custom_call.1} parent=1 // pred_check_branch
      %17 = sbr.rel (0) target = $region5
    $region4: #{tpu_custom_call.1} parent=1 // pred_region
      _
    $region5: #{tpu_custom_call.1} parent=1 // pred_fallthru
      _
    // Predicated region
    $region6: #{tpu_custom_call.1} parent=1 // pred_check
      _
    $region7: #{tpu_custom_call.1} parent=1 // pred_check_branch
      %19 = sbr.rel (0) target = $region9
    $region8: #{tpu_custom_call.1} parent=1 // pred_region
      _
    $region9: #{tpu_custom_call.1} parent=1 // pred_fallthru
      _
    // Predicated region
    $region10: #{tpu_custom_call.1} parent=1 // pred_check
      _
    $region11: #{tpu_custom_call.1} parent=1 // pred_check_branch
      %21 = sbr.rel (0) target = $region13
    $region12: #{tpu_custom_call.1} parent=1 // pred_region
      _
    $region13: #{tpu_custom_call.1} parent=1 // pred_fallthru
      _
    // Predicated region
    $region14: #{tpu_custom_call.1} parent=1 // pred_check
      _
    $region15: #{tpu_custom_call.1} parent=1 // pred_check_branch
      %23 = sbr.rel (0) target = $region17
    $region16: #{tpu_custom_call.1} parent=1 // pred_region
      _
    $region17: #{tpu_custom_call.1} parent=1 // pred_fallthru
      _
    // Predicated region
    $region18: #{tpu_custom_call.1} parent=1 // pred_check
      _
    $region19: #{tpu_custom_call.1} parent=1 // pred_check_branch
      %25 = sbr.rel (0) target = $region21
    $region20: #{tpu_custom_call.1} parent=1 // pred_region
      _
    $region21: #{tpu_custom_call.1} parent=1 // pred_fallthru
      _
    // Predicated region
    $region22: #{tpu_custom_call.1} parent=1 // pred_check
      _
    $region23: #{tpu_custom_call.1} parent=1 // pred_check_branch
      %27 = sbr.rel (0) target = $region25
    $region24: #{tpu_custom_call.1} parent=1 // pred_region
      _
    $region25: #{tpu_custom_call.1} parent=1 // pred_fallthru
      _
    // Predicated region
    $region26: #{tpu_custom_call.1} parent=1 // pred_check
      _
    $region27: #{tpu_custom_call.1} parent=1 // pred_check_branch
      %29 = sbr.rel (0) target = $region29
    $region28: #{tpu_custom_call.1} parent=1 // pred_region
      _
    $region29: #{tpu_custom_call.1} parent=1 // pred_fallthru
      _
    // Predicated region
    $region30: #{tpu_custom_call.1} parent=1 // pred_check
      _
    $region31: #{tpu_custom_call.1} parent=1 // pred_check_branch
      %31 = sbr.rel (0) target = $region33
    $region32: #{tpu_custom_call.1} parent=1 // pred_region
      _
    $region33: #{tpu_custom_call.1} parent=1 // pred_fallthru
      _
    // Predicated region
    $region34: #{tpu_custom_call.1} parent=1 // pred_check
      _
    $region35: #{tpu_custom_call.1} parent=1 // pred_check_branch
      %33 = sbr.rel (0) target = $region37
    $region36: #{tpu_custom_call.1} parent=1 // pred_region
      _
    $region37: #{tpu_custom_call.1} parent=1 // pred_fallthru
      _
    // Predicated region
    $region38: #{tpu_custom_call.1} parent=1 // pred_check
      _
    $region39: #{tpu_custom_call.1} parent=1 // pred_check_branch
      %35 = sbr.rel (0) target = $region41
    $region40: #{tpu_custom_call.1} parent=1 // pred_region
      _
    $region41: #{tpu_custom_call.1} parent=1 // pred_fallthru
      _
    %v36 = vld [vmem:[%s0] sm:$0xff]
    %v37 = vld [vmem:[%s0 + $0x8] sm:$0xff]
    %v38 = vld [vmem:[%s0 + $0x10] sm:$0xff]
    %v39 = vld [vmem:[%s0 + $0x18] sm:$0x1]
    %v40 = vld [vmem:[%s1] sm:$0xff]
    %v41 = vld [vmem:[%s1 + $0x8] sm:$0xff]
    %v42 = vld [vmem:[%s1 + $0x10] sm:$0xf]
    %v43 = vld [vmem:[%s2] sm:$0xff]
    %v44 = vld [vmem:[%s2 + $0x8] sm:$0xff]
    %v45 = vld [vmem:[%s2 + $0x10] sm:$0xf]
    %47 = vset.pattern.permute.xlu0 0
    %48 = vperm.xlu0 %47, %v43
    %v49 = vpop.permute.xlu0 %48
    %52 = vset.pattern.permute.xlu0 0
    %53 = vperm.xlu0 %52, %v44
    %v54 = vpop.permute.xlu0 %53
    %57 = vset.pattern.permute.xlu0 0
    %58 = vperm.xlu0 %57, %v45
    %v59 = vpop.permute.xlu0 %58
    %vm61 = vcmask 203776
    %v63 = vsel %vm61, %v40, 0
    %v66 = vsel %vm61, %v41, 0
    %v69 = vsel %vm61, %v42, 0
    %vm71 = vcmask 1040384
    %v73 = vsel %vm71, %v39, 0
    %75 = vmatprep.subr.mxu0 0.0
    %76 = vmatpush1.msra.mxu0 %v36
    %77 = vmatprep.subr.mxu0 0.0
    %78 = vmatpush1.msra.mxu0 %v37
    %79 = vmatprep.subr.mxu0 0.0
    %80 = vmatpush1.msra.mxu0 %v38
    %81 = vmatprep.subr.mxu0 0.0
    %82 = vmatpush1.msra.mxu0 %v73
    %83 = vmatprep.subr.mxu0 0.0
    %84 = vmatpush1.msra.mxu0 0.0
    %85 = vmatprep.subr.mxu0 0.0
    %86 = vmatpush1.msra.mxu0 0.0
    %87 = vmatprep.subr.mxu0 0.0
    %88 = vmatpush1.msra.mxu0 0.0
    %89 = vmatprep.subr.mxu0 0.0
    %90 = vmatpush1.msra.mxu0 0.0
    %91 = vmatprep.subr.mxu0 0.0
    %92 = vmatpush1.msra.mxu0 0.0
    %93 = vmatprep.subr.mxu0 0.0
    %94 = vmatpush1.msra.mxu0 0.0
    %95 = vmatprep.subr.mxu0 0.0
    %96 = vmatpush1.msra.mxu0 0.0
    %97 = vmatprep.subr.mxu0 0.0
    %98 = vmatpush1.msra.mxu0 0.0
    %99 = vmatprep.subr.mxu0 0.0
    %100 = vmatpush1.msra.mxu0 0.0
    %101 = vmatprep.subr.mxu0 0.0
    %102 = vmatpush1.msra.mxu0 0.0
    %103 = vmatprep.subr.mxu0 0.0
    %104 = vmatpush1.msra.mxu0 0.0
    %105 = vmatprep.subr.mxu0 0.0
    %106 = vmatpush1.msra.mxu0 0.0
    %107 = vmatprep.subr.mxu0 0.0
    %108 = vmatpush1.msra.mxu0 0.0
    %109 = vmatprep.subr.mxu0 0.0
    %110 = vmatpush1.msra.mxu0 0.0
    %111 = vmatprep.subr.mxu0 0.0
    %112 = vmatpush1.msra.mxu0 0.0
    %113 = vmatprep.subr.mxu0 0.0
    %114 = vmatpush1.msra.mxu0 0.0
    %115 = vmatprep.subr.mxu0 0.0
    %116 = vmatpush1.msra.mxu0 0.0
    %117 = vmatprep.subr.mxu0 0.0
    %118 = vmatpush1.msra.mxu0 0.0
    %119 = vmatprep.subr.mxu0 0.0
    %120 = vmatpush1.msra.mxu0 0.0
    %121 = vmatprep.subr.mxu0 0.0
    %122 = vmatpush1.msra.mxu0 0.0
    %123 = vmatprep.subr.mxu0 0.0
    %124 = vmatpush1.msra.mxu0 0.0
    %125 = vmatprep.subr.mxu0 0.0
    %126 = vmatpush1.msra.mxu0 0.0
    %127 = vmatprep.subr.mxu0 0.0
    %128 = vmatpush1.msra.mxu0 0.0
    %129 = vmatprep.subr.mxu0 0.0
    %130 = vmatpush1.msra.mxu0 0.0
    %131 = vmatprep.subr.mxu0 0.0
    %132 = vmatpush1.msra.mxu0 0.0
    %133 = vmatprep.subr.mxu0 0.0
    %134 = vmatpush1.msra.mxu0 0.0
    %135 = vmatprep.subr.mxu0 0.0
    %136 = vmatpush1.msra.mxu0 0.0
    %137 = vmatprep.subr.mxu0 0.0
    %138 = vmatpush1.msra.mxu0 0.0
    %139 = vmatprep.mubr.f32.mxu0 0.0
    %140 = vmatmul.mubr.f32.gmra.mrb[0].mxu0 %v63
    %v141 = vpop.f32.mrb[0].mxu0
    %v142 = vadd.f32 %v49, %v141
    %v143 = vpop.f32.mrb[0].mxu0
    %144 = vmatprep.mubr.f32.mxu0 0.0
    %145 = vmatmul.mubr.f32.gmra.mrb[0].mxu0 %v66
    %v146 = vpop.f32.mrb[0].mxu0
    %v147 = vadd.f32 %v54, %v146
    %v148 = vpop.f32.mrb[0].mxu0
    %149 = vmatprep.mubr.f32.mxu0 0.0
    %150 = vmatmul.mubr.f32.gmra.mrb[0].mxu0 %v69
    %v151 = vpop.f32.mrb[0].mxu0
    %v152 = vadd.f32 %v59, %v151
    %v153 = vpop.f32.mrb[0].mxu0
    %154 = vdwg.mxu0
    %v155 = vmax.f32 %v142, 0.0
    %v156 = vmax.f32 %v147, 0.0
    %v157 = vmax.f32 %v152, 0.0
    %v158 = vld [vmem:[%s3] sm:$0xff]
    %v159 = vld [vmem:[%s3 + $0x8] sm:$0xff]
    %v160 = vld [vmem:[%s3 + $0x10] sm:$0xf]
    %v161 = vld [vmem:[%s4] sm:$0xff]
    %v162 = vld [vmem:[%s4 + $0x8] sm:$0xff]
    %v163 = vld [vmem:[%s4 + $0x10] sm:$0xf]
    %165 = vset.pattern.permute.xlu0 0
    %166 = vperm.xlu0 %165, %v161
    %v167 = vpop.permute.xlu0 %166
    %170 = vset.pattern.permute.xlu0 0
    %171 = vperm.xlu0 %170, %v162
    %v172 = vpop.permute.xlu0 %171
    %175 = vset.pattern.permute.xlu0 0
    %176 = vperm.xlu0 %175, %v163
    %v177 = vpop.permute.xlu0 %176
    %vm179 = vcmask 162816
    %v181 = vsel %vm179, %v158, 0
    %v184 = vsel %vm179, %v159, 0
    %v187 = vsel %vm179, %v160, 0
    %vm189 = vcmask 1043456
    %v191 = vsel %vm189, %v157, 0
    %193 = vmatprep.subr.mxu0 0.0
    %194 = vmatpush1.msra.mxu0 %v155
    %195 = vmatprep.subr.mxu0 0.0
    %196 = vmatpush1.msra.mxu0 %v156
    %197 = vmatprep.subr.mxu0 0.0
    %198 = vmatpush1.msra.mxu0 %v191
    %199 = vmatprep.subr.mxu0 0.0
    %200 = vmatpush1.msra.mxu0 0.0
    %201 = vmatprep.subr.mxu0 0.0
    %202 = vmatpush1.msra.mxu0 0.0
    %203 = vmatprep.subr.mxu0 0.0
    %204 = vmatpush1.msra.mxu0 0.0
    %205 = vmatprep.subr.mxu0 0.0
    %206 = vmatpush1.msra.mxu0 0.0
    %207 = vmatprep.subr.mxu0 0.0
    %208 = vmatpush1.msra.mxu0 0.0
    %209 = vmatprep.subr.mxu0 0.0
    %210 = vmatpush1.msra.mxu0 0.0
    %211 = vmatprep.subr.mxu0 0.0
    %212 = vmatpush1.msra.mxu0 0.0
    %213 = vmatprep.subr.mxu0 0.0
    %214 = vmatpush1.msra.mxu0 0.0
    %215 = vmatprep.subr.mxu0 0.0
    %216 = vmatpush1.msra.mxu0 0.0
    %217 = vmatprep.subr.mxu0 0.0
    %218 = vmatpush1.msra.mxu0 0.0
    %219 = vmatprep.subr.mxu0 0.0
    %220 = vmatpush1.msra.mxu0 0.0
    %221 = vmatprep.subr.mxu0 0.0
    %222 = vmatpush1.msra.mxu0 0.0
    %223 = vmatprep.subr.mxu0 0.0
    %224 = vmatpush1.msra.mxu0 0.0
    %225 = vmatprep.subr.mxu0 0.0
    %226 = vmatpush1.msra.mxu0 0.0
    %227 = vmatprep.subr.mxu0 0.0
    %228 = vmatpush1.msra.mxu0 0.0
    %229 = vmatprep.subr.mxu0 0.0
    %230 = vmatpush1.msra.mxu0 0.0
    %231 = vmatprep.subr.mxu0 0.0
    %232 = vmatpush1.msra.mxu0 0.0
    %233 = vmatprep.subr.mxu0 0.0
    %234 = vmatpush1.msra.mxu0 0.0
    %235 = vmatprep.subr.mxu0 0.0
    %236 = vmatpush1.msra.mxu0 0.0
    %237 = vmatprep.subr.mxu0 0.0
    %238 = vmatpush1.msra.mxu0 0.0
    %239 = vmatprep.subr.mxu0 0.0
    %240 = vmatpush1.msra.mxu0 0.0
    %241 = vmatprep.subr.mxu0 0.0
    %242 = vmatpush1.msra.mxu0 0.0
    %243 = vmatprep.subr.mxu0 0.0
    %244 = vmatpush1.msra.mxu0 0.0
    %245 = vmatprep.subr.mxu0 0.0
    %246 = vmatpush1.msra.mxu0 0.0
    %247 = vmatprep.subr.mxu0 0.0
    %248 = vmatpush1.msra.mxu0 0.0
    %249 = vmatprep.subr.mxu0 0.0
    %250 = vmatpush1.msra.mxu0 0.0
    %251 = vmatprep.subr.mxu0 0.0
    %252 = vmatpush1.msra.mxu0 0.0
    %253 = vmatprep.subr.mxu0 0.0
    %254 = vmatpush1.msra.mxu0 0.0
    %255 = vmatprep.subr.mxu0 0.0
    %256 = vmatpush1.msra.mxu0 0.0
    %257 = vmatprep.mubr.f32.mxu0 0.0
    %258 = vmatmul.mubr.f32.gmra.mrb[0].mxu0 %v181
    %v259 = vpop.f32.mrb[0].mxu0
    %v260 = vadd.f32 %v167, %v259
    %v261 = vpop.f32.mrb[0].mxu0
    %262 = vmatprep.mubr.f32.mxu0 0.0
    %263 = vmatmul.mubr.f32.gmra.mrb[0].mxu0 %v184
    %v264 = vpop.f32.mrb[0].mxu0
    %v265 = vadd.f32 %v172, %v264
    %v266 = vpop.f32.mrb[0].mxu0
    %267 = vmatprep.mubr.f32.mxu0 0.0
    %268 = vmatmul.mubr.f32.gmra.mrb[0].mxu0 %v187
    %v269 = vpop.f32.mrb[0].mxu0
    %v270 = vadd.f32 %v177, %v269
    %v271 = vpop.f32.mrb[0].mxu0
    %272 = vdwg.mxu0
    %v273 = vld [vmem:[%s9] sm:$0xff]
    %v274 = vld [vmem:[%s9 + $0x8] sm:$0x3]
    %v275 = vmul.f32 %v265, 0.5
    %v276 = vmul.f32 %v270, 0.5
    %v277 = vmul.f32 %v275, 1.442695
    %v278 = vpow.pop %v277
    %v279 = vmul.f32 %v276, 1.442695
    %v280 = vpow.pop %v279
    %vm283 = vcmask 1045504
    %v284 = vrot.slane %v278, 2
    %v285 = vrot.slane %v280, 2
    %v286 = vsel %vm283, %v284, %v285
    %v289 = vmul.f32 %v273, %v286
    %v290 = vmul.f32 %v274, %v285
    %v291 = vadd.f32 %v260, %v289
    %v292 = vadd.f32 %v265, %v290
    %v293 = vld [vmem:[%s5] sm:$0xff]
    %v294 = vld [vmem:[%s5 + $0x8] sm:$0xff]
    %v295 = vld [vmem:[%s5 + $0x10] sm:$0xf]
    %v296 = vld [vmem:[%s6] sm:$0xff]
    %v297 = vld [vmem:[%s6 + $0x8] sm:$0xff]
    %v298 = vld [vmem:[%s6 + $0x10] sm:$0xf]
    %300 = vset.pattern.permute.xlu0 0
    %301 = vperm.xlu0 %300, %v296
    %v302 = vpop.permute.xlu0 %301
    %305 = vset.pattern.permute.xlu0 0
    %306 = vperm.xlu0 %305, %v297
    %v307 = vpop.permute.xlu0 %306
    %310 = vset.pattern.permute.xlu0 0
    %311 = vperm.xlu0 %310, %v298
    %v312 = vpop.permute.xlu0 %311
    %vm314 = vcmask 80896
    %v316 = vsel %vm314, %v293, 0
    %v319 = vsel %vm314, %v294, 0
    %v322 = vsel %vm314, %v295, 0
    %vm324 = vcmask 1041408
    %v326 = vsel %vm324, %v292, 0
    %328 = vmatprep.subr.mxu0 0.0
    %329 = vmatpush1.msra.mxu0 %v291
    %330 = vmatprep.subr.mxu0 0.0
    %331 = vmatpush1.msra.mxu0 %v326
    %332 = vmatprep.subr.mxu0 0.0
    %333 = vmatpush1.msra.mxu0 0.0
    %334 = vmatprep.subr.mxu0 0.0
    %335 = vmatpush1.msra.mxu0 0.0
    %336 = vmatprep.subr.mxu0 0.0
    %337 = vmatpush1.msra.mxu0 0.0
    %338 = vmatprep.subr.mxu0 0.0
    %339 = vmatpush1.msra.mxu0 0.0
    %340 = vmatprep.subr.mxu0 0.0
    %341 = vmatpush1.msra.mxu0 0.0
    %342 = vmatprep.subr.mxu0 0.0
    %343 = vmatpush1.msra.mxu0 0.0
    %344 = vmatprep.subr.mxu0 0.0
    %345 = vmatpush1.msra.mxu0 0.0
    %346 = vmatprep.subr.mxu0 0.0
    %347 = vmatpush1.msra.mxu0 0.0
    %348 = vmatprep.subr.mxu0 0.0
    %349 = vmatpush1.msra.mxu0 0.0
    %350 = vmatprep.subr.mxu0 0.0
    %351 = vmatpush1.msra.mxu0 0.0
    %352 = vmatprep.subr.mxu0 0.0
    %353 = vmatpush1.msra.mxu0 0.0
    %354 = vmatprep.subr.mxu0 0.0
    %355 = vmatpush1.msra.mxu0 0.0
    %356 = vmatprep.subr.mxu0 0.0
    %357 = vmatpush1.msra.mxu0 0.0
    %358 = vmatprep.subr.mxu0 0.0
    %359 = vmatpush1.msra.mxu0 0.0
    %360 = vmatprep.subr.mxu0 0.0
    %361 = vmatpush1.msra.mxu0 0.0
    %362 = vmatprep.subr.mxu0 0.0
    %363 = vmatpush1.msra.mxu0 0.0
    %364 = vmatprep.subr.mxu0 0.0
    %365 = vmatpush1.msra.mxu0 0.0
    %366 = vmatprep.subr.mxu0 0.0
    %367 = vmatpush1.msra.mxu0 0.0
    %368 = vmatprep.subr.mxu0 0.0
    %369 = vmatpush1.msra.mxu0 0.0
    %370 = vmatprep.subr.mxu0 0.0
    %371 = vmatpush1.msra.mxu0 0.0
    %372 = vmatprep.subr.mxu0 0.0
    %373 = vmatpush1.msra.mxu0 0.0
    %374 = vmatprep.subr.mxu0 0.0
    %375 = vmatpush1.msra.mxu0 0.0
    %376 = vmatprep.subr.mxu0 0.0
    %377 = vmatpush1.msra.mxu0 0.0
    %378 = vmatprep.subr.mxu0 0.0
    %379 = vmatpush1.msra.mxu0 0.0
    %380 = vmatprep.subr.mxu0 0.0
    %381 = vmatpush1.msra.mxu0 0.0
    %382 = vmatprep.subr.mxu0 0.0
    %383 = vmatpush1.msra.mxu0 0.0
    %384 = vmatprep.subr.mxu0 0.0
    %385 = vmatpush1.msra.mxu0 0.0
    %386 = vmatprep.subr.mxu0 0.0
    %387 = vmatpush1.msra.mxu0 0.0
    %388 = vmatprep.subr.mxu0 0.0
    %389 = vmatpush1.msra.mxu0 0.0
    %390 = vmatprep.subr.mxu0 0.0
    %391 = vmatpush1.msra.mxu0 0.0
    %392 = vmatprep.mubr.f32.mxu0 0.0
    %393 = vmatmul.mubr.f32.gmra.mrb[0].mxu0 %v316
    %v394 = vpop.f32.mrb[0].mxu0
    %v395 = vadd.f32 %v302, %v394
    %v396 = vpop.f32.mrb[0].mxu0
    %397 = vmatprep.mubr.f32.mxu0 0.0
    %398 = vmatmul.mubr.f32.gmra.mrb[0].mxu0 %v319
    %v399 = vpop.f32.mrb[0].mxu0
    %v400 = vadd.f32 %v307, %v399
    %v401 = vpop.f32.mrb[0].mxu0
    %402 = vmatprep.mubr.f32.mxu0 0.0
    %403 = vmatmul.mubr.f32.gmra.mrb[0].mxu0 %v322
    %v404 = vpop.f32.mrb[0].mxu0
    %v405 = vadd.f32 %v312, %v404
    %v406 = vpop.f32.mrb[0].mxu0
    %407 = vdwg.mxu0
    %v408 = vmax.f32 %v395, 0.0
    %v409 = vmax.f32 %v400, 0.0
    %v410 = vmax.f32 %v405, 0.0
    %v411 = vld [vmem:[%s7] sm:$0xff]
    %v412 = vld [vmem:[%s7 + $0x8] sm:$0xff]
    %v413 = vld [vmem:[%s7 + $0x10] sm:$0xff]
    %v414 = vld [vmem:[%s7 + $0x18] sm:$0x1]
    %v415 = vld [vmem:[%s8] sm:$0xff]
    %v416 = vld [vmem:[%s8 + $0x8] sm:$0xff]
    %v417 = vld [vmem:[%s8 + $0x10] sm:$0xff]
    %v418 = vld [vmem:[%s8 + $0x18] sm:$0x1]
    %420 = vset.pattern.permute.xlu0 0
    %421 = vperm.xlu0 %420, %v415
    %v422 = vpop.permute.xlu0 %421
    %425 = vset.pattern.permute.xlu0 0
    %426 = vperm.xlu0 %425, %v416
    %v427 = vpop.permute.xlu0 %426
    %430 = vset.pattern.permute.xlu0 0
    %431 = vperm.xlu0 %430, %v417
    %v432 = vpop.permute.xlu0 %431
    %435 = vset.pattern.permute.xlu0 0
    %436 = vperm.xlu0 %435, %v418
    %v437 = vpop.permute.xlu0 %436
    %v440 = vsel %vm179, %v411, 0
    %v443 = vsel %vm179, %v412, 0
    %v446 = vsel %vm179, %v413, 0
    %v449 = vsel %vm179, %v414, 0
    %v452 = vsel %vm189, %v410, 0
    %454 = vmatprep.subr.mxu0 0.0
    %455 = vmatpush1.msra.mxu0 %v408
    %456 = vmatprep.subr.mxu0 0.0
    %457 = vmatpush1.msra.mxu0 %v409
    %458 = vmatprep.subr.mxu0 0.0
    %459 = vmatpush1.msra.mxu0 %v452
    %460 = vmatprep.subr.mxu0 0.0
    %461 = vmatpush1.msra.mxu0 0.0
    %462 = vmatprep.subr.mxu0 0.0
    %463 = vmatpush1.msra.mxu0 0.0
    %464 = vmatprep.subr.mxu0 0.0
    %465 = vmatpush1.msra.mxu0 0.0
    %466 = vmatprep.subr.mxu0 0.0
    %467 = vmatpush1.msra.mxu0 0.0
    %468 = vmatprep.subr.mxu0 0.0
    %469 = vmatpush1.msra.mxu0 0.0
    %470 = vmatprep.subr.mxu0 0.0
    %471 = vmatpush1.msra.mxu0 0.0
    %472 = vmatprep.subr.mxu0 0.0
    %473 = vmatpush1.msra.mxu0 0.0
    %474 = vmatprep.subr.mxu0 0.0
    %475 = vmatpush1.msra.mxu0 0.0
    %476 = vmatprep.subr.mxu0 0.0
    %477 = vmatpush1.msra.mxu0 0.0
    %478 = vmatprep.subr.mxu0 0.0
    %479 = vmatpush1.msra.mxu0 0.0
    %480 = vmatprep.subr.mxu0 0.0
    %481 = vmatpush1.msra.mxu0 0.0
    %482 = vmatprep.subr.mxu0 0.0
    %483 = vmatpush1.msra.mxu0 0.0
    %484 = vmatprep.subr.mxu0 0.0
    %485 = vmatpush1.msra.mxu0 0.0
    %486 = vmatprep.subr.mxu0 0.0
    %487 = vmatpush1.msra.mxu0 0.0
    %488 = vmatprep.subr.mxu0 0.0
    %489 = vmatpush1.msra.mxu0 0.0
    %490 = vmatprep.subr.mxu0 0.0
    %491 = vmatpush1.msra.mxu0 0.0
    %492 = vmatprep.subr.mxu0 0.0
    %493 = vmatpush1.msra.mxu0 0.0
    %494 = vmatprep.subr.mxu0 0.0
    %495 = vmatpush1.msra.mxu0 0.0
    %496 = vmatprep.subr.mxu0 0.0
    %497 = vmatpush1.msra.mxu0 0.0
    %498 = vmatprep.subr.mxu0 0.0
    %499 = vmatpush1.msra.mxu0 0.0
    %500 = vmatprep.subr.mxu0 0.0
    %501 = vmatpush1.msra.mxu0 0.0
    %502 = vmatprep.subr.mxu0 0.0
    %503 = vmatpush1.msra.mxu0 0.0
    %504 = vmatprep.subr.mxu0 0.0
    %505 = vmatpush1.msra.mxu0 0.0
    %506 = vmatprep.subr.mxu0 0.0
    %507 = vmatpush1.msra.mxu0 0.0
    %508 = vmatprep.subr.mxu0 0.0
    %509 = vmatpush1.msra.mxu0 0.0
    %510 = vmatprep.subr.mxu0 0.0
    %511 = vmatpush1.msra.mxu0 0.0
    %512 = vmatprep.subr.mxu0 0.0
    %513 = vmatpush1.msra.mxu0 0.0
    %514 = vmatprep.subr.mxu0 0.0
    %515 = vmatpush1.msra.mxu0 0.0
    %516 = vmatprep.subr.mxu0 0.0
    %517 = vmatpush1.msra.mxu0 0.0
    %518 = vmatprep.mubr.f32.mxu0 0.0
    %519 = vmatmul.mubr.f32.gmra.mrb[0].mxu0 %v440
    %v520 = vpop.f32.mrb[0].mxu0
    %v521 = vadd.f32 %v422, %v520
    %v522 = vpop.f32.mrb[0].mxu0
    %523 = vmatprep.mubr.f32.mxu0 0.0
    %524 = vmatmul.mubr.f32.gmra.mrb[0].mxu0 %v443
    %v525 = vpop.f32.mrb[0].mxu0
    %v526 = vadd.f32 %v427, %v525
    %v527 = vpop.f32.mrb[0].mxu0
    %528 = vmatprep.mubr.f32.mxu0 0.0
    %529 = vmatmul.mubr.f32.gmra.mrb[0].mxu0 %v446
    %v530 = vpop.f32.mrb[0].mxu0
    %v531 = vadd.f32 %v432, %v530
    %v532 = vpop.f32.mrb[0].mxu0
    %533 = vmatprep.mubr.f32.mxu0 0.0
    %534 = vmatmul.mubr.f32.gmra.mrb[0].mxu0 %v449
    %v535 = vpop.f32.mrb[0].mxu0
    %v536 = vadd.f32 %v437, %v535
    %v537 = vpop.f32.mrb[0].mxu0
    %538 = vdwg.mxu0
    %v541 = vrot.slane %v260, 7
    %v542 = vrot.slane %v265, 7
    %v543 = vsel %vm71, %v541, %v542
    %v547 = vrot.slane %v270, 7
    %v548 = vsel %vm71, %v542, %v547
    %v551 = vsel %vm71, %v536, %v541
    %vm552 = vcmask 1042432
    %v553 = vsel %vm552, %v543, %v542
    %554 = vst [vmem:[#allocation2] sm:$0xff] %v521
    %555 = vst [vmem:[#allocation2 + $0x8] sm:$0xff] %v526
    %556 = vst [vmem:[#allocation2 + $0x10] sm:$0xff] %v531
    %557 = vst [vmem:[#allocation2 + $0x18] sm:$0xff] %v551
    %558 = vst [vmem:[#allocation2 + $0x20] sm:$0xff] %v553
    %559 = vst [vmem:[#allocation2 + $0x28] sm:$0x1f] %v548
    // Predicated region
    $region42: #{tpu_custom_call.1} parent=1 // pred_check
      _
    $region43: #{tpu_custom_call.1} parent=1 // pred_check_branch
      %561 = sbr.rel (0) target = $region45
    $region44: #{tpu_custom_call.1} parent=1 // pred_region
      %s563 = ssub.s32 768, 768
      %564 = vsyncadd [#allocation3], %s563
      %s565 = sshll.u32 [#allocation2], 4
      %s566 = int_to_ptr.vmem [resolvable:$true] %s565
      %571 = dma.vmem_to_hbm [thread:$0]  %s566, 768, %s10, [#allocation3], 128, 128, 8
    $region45: #{tpu_custom_call.1} parent=1 // pred_fallthru
      _
    // Predicated region
    $region46: #{tpu_custom_call.1} parent=1 // pred_check
      _
    $region47: #{tpu_custom_call.1} parent=1 // pred_check_branch
      %573 = sbr.rel (0) target = $region49
    $region48: #{tpu_custom_call.1} parent=1 // pred_region
      %574 = dma.done [#allocation3], 768
    $region49: #{tpu_custom_call.1} parent=1 // pred_fallthru
      _
    %575 = vsyncpa [#allocation3], 1

</llo_original>
